<compile_context>
chip_gen: v7x
topology: tpu7x:2x2x1
jax: 0.10.0
libtpu: 0.0.40
codegen_flags: <defaults>
</compile_context>

<pallas_src>
import functools

import jax
import jax.numpy as jnp
from jax.experimental import pallas as pl
from jax.experimental.pallas import tpu as pltpu

HID1 = 32       # fc1 width
HID2 = 32       # fc2 width
HID3 = 16       # fc3 width (folded into W3o at pack time)
PACK_W = 32     # minimum column width of the packed parameter array
MAX_TILE = 2048  # max batch (lane) tile per grid step


def _round_up(n, m):
    return ((n + m - 1) // m) * m


def _choose_tile(b_pad):
    """b_pad: padded batch size, a multiple of 128.

    Returns a tile size that (a) is a multiple of 128 (lane-dense), (b) divides
    b_pad exactly (no ragged last block, VMEM bounded), (c) is <= MAX_TILE, and
    (d) yields >= 2 grid steps whenever b_pad >= 256 so the "parallel" grid axis
    can shard across both TensorCores on v7x.
    """
    m = b_pad // 128
    best = 1
    for d in range(1, min(m, MAX_TILE // 128) + 1):
        if m % d == 0 and (m // d >= 2 or m == 1):
            best = d
    return 128 * best


def actor_kernel(xT_ref, p_ref, out_ref, *, sp, a_pad):
    """softmax over actions of W3o^T @ relu(W2^T @ relu(W1^T @ x^T + b1) + b2) + b3o.

    xT_ref : (sp, TB)     batch on the 128-lane axis, features zero-padded to sp
    p_ref  : (R, C)       packed parameters (resident across grid steps)
    out_ref: (a_pad, TB)  lane-dense probability tile (padded action rows == 0)
    """
    x = xT_ref[...]                                         # (sp, TB)

    # Static, 8-row-aligned section offsets inside the packed parameter block.
    r_w1 = 0
    r_w2 = HID1
    r_w3 = HID1 + HID2
    r_b = HID1 + HID2 + a_pad

    w1t = p_ref[pl.ds(r_w1, HID1), pl.ds(0, sp)]            # (32, sp)
    w2t = p_ref[pl.ds(r_w2, HID2), pl.ds(0, HID1)]          # (32, 32)
    w3ot = p_ref[pl.ds(r_w3, a_pad), pl.ds(0, HID2)]        # (a_pad, 32)
    b1 = p_ref[pl.ds(r_b, HID1), pl.ds(0, 1)]               # (32, 1)
    b2 = p_ref[pl.ds(r_b, HID1), pl.ds(1, 1)]               # (32, 1)
    b3o = p_ref[pl.ds(r_b, a_pad), pl.ds(2, 1)]             # (a_pad, 1); pad rows = -1e30

    h1 = jnp.maximum(
        jnp.dot(w1t, x, preferred_element_type=jnp.float32) + b1, 0.0)   # (32, TB)
    h2 = jnp.maximum(
        jnp.dot(w2t, h1, preferred_element_type=jnp.float32) + b2, 0.0)  # (32, TB)
    logits = jnp.dot(w3ot, h2, preferred_element_type=jnp.float32) + b3o  # (a_pad, TB)

    # softmax over actions (axis 0) at full padded width; padded rows have
    # logit -1e30 -> exp underflows to exactly 0, valid rows are bit-identical.
    m = jnp.max(logits, axis=0, keepdims=True)
    e = jnp.exp(logits - m)
    denom = jnp.sum(e, axis=0, keepdims=True)
    out_ref[...] = (e / denom).astype(out_ref.dtype)        # exact divide


def pack_params(params, state_space, action_space):
    """Fuse fc3+out and pack all layers (transposed) into one (rows, C) fp32 array."""
    assert action_space <= HID1, "packed layout assumes action_space <= 32"
    sp = max(_round_up(state_space, 8), 8)
    a_pad = max(_round_up(action_space, 8), 8)
    C = max(sp, PACK_W)

    w1, b1 = params["w1"], params["b1"]     # (S,32), (1,32)
    w2, b2 = params["w2"], params["b2"]     # (32,32), (1,32)
    w3, b3 = params["w3"], params["b3"]     # (32,16), (1,16)
    wo, bo = params["wo"], params["bo"]     # (16,A), (1,A)

    # No activation between fc3 and out -> fold them into one matmul.
    w3o = w3 @ wo               # (32, A)
    b3o = b3 @ wo + bo          # (1, A)

    def pad_to(v, rows, cols):
        return jnp.pad(v, ((0, rows - v.shape[0]), (0, cols - v.shape[1])))

    w1t_blk = pad_to(w1.T, HID1, C)          # rows [0, 32): W1^T, cols >= S zero
    w2t_blk = pad_to(w2.T, HID2, C)          # rows [32, 64): W2^T
    w3ot_blk = pad_to(w3o.T, a_pad, C)       # rows [64, 64+a_pad): W3o^T, pad rows zero

    # Bias block: col0=b1, col1=b2, col2=b3o (padded action rows get -1e30 so the
    # full-width softmax zeroes them exactly).
    b3o_col = jnp.full((HID1, 1), -1e30, dtype=jnp.float32)
    b3o_col = b3o_col.at[:action_space, 0].set(b3o[0, :])
    bias_blk = pad_to(jnp.concatenate([b1.T, b2.T, b3o_col], axis=1), HID1, C)

    packed = jnp.concatenate(
        [w1t_blk, w2t_blk, w3ot_blk, bias_blk], axis=0).astype(jnp.float32)
    return packed, sp, a_pad


def actor_net_forward(x, packed, *, state_space, action_space, sp, a_pad):
    """x: (B, state_space) float32. packed/sp/a_pad: output of pack_params. Returns (B, A)."""
    B, S = x.shape
    assert S == state_space
    A = action_space

    # Transposed, lane-dense layout: batch on the lane axis.
    xT = x.astype(jnp.float32).T                              # (S, B)
    if S < sp:
        xT = jnp.pad(xT, ((0, sp - S), (0, 0)))               # zero-pad features
    b_pad = _round_up(max(B, 1), 128)
    if b_pad > B:
        xT = jnp.pad(xT, ((0, 0), (0, b_pad - B)))            # zero-pad batch lanes

    tb = _choose_tile(b_pad)
    grid = (b_pad // tb,)

    kernel = functools.partial(actor_kernel, sp=sp, a_pad=a_pad)

    cost = pl.CostEstimate(
        flops=2 * b_pad * (sp * HID1 + HID1 * HID2 + HID2 * a_pad),
        transcendentals=b_pad * a_pad,
        bytes_accessed=int(xT.size * 4 + a_pad * b_pad * 4 + packed.size * 4),
    )

    outT = pl.pallas_call(
        kernel,
        out_shape=jax.ShapeDtypeStruct((a_pad, b_pad), jnp.float32),
        grid=grid,
        in_specs=[
            pl.BlockSpec((sp, tb), lambda i: (0, i)),          # batch tile of x^T
            pl.BlockSpec(packed.shape, lambda i: (0, 0)),      # params resident
        ],
        out_specs=pl.BlockSpec((a_pad, tb), lambda i: (0, i)),  # lane-dense output
        compiler_params=pltpu.CompilerParams(
            dimension_semantics=("parallel",)),
        cost_estimate=cost,
    )(xT, packed)

    # Strip action/batch padding and un-transpose in the wrapper.
    return outT[:A, :B].T


def init_params(key, state_space, action_space):
    """PyTorch-default Linear init; weights stored as (in, out)."""
    def linear(key, fan_in, fan_out):
        kw, kb = jax.random.split(key)
        bound = 1.0 / jnp.sqrt(fan_in)
        w = jax.random.uniform(kw, (fan_in, fan_out), jnp.float32, -bound, bound)
        b = jax.random.uniform(kb, (1, fan_out), jnp.float32, -bound, bound)
        return w, b

    k1, k2, k3, k4 = jax.random.split(key, 4)
    w1, b1 = linear(k1, state_space, HID1)
    w2, b2 = linear(k2, HID1, HID2)
    w3, b3 = linear(k3, HID2, HID3)
    wo, bo = linear(k4, HID3, action_space)
    return {"w1": w1, "b1": b1, "w2": w2, "b2": b2,
            "w3": w3, "b3": b3, "wo": wo, "bo": bo}


def actor_ref(x, params):
    """Pure-JAX reference of the PyTorch forward."""
    h1 = jnp.maximum(x @ params["w1"] + params["b1"], 0.0)
    h2 = jnp.maximum(h1 @ params["w2"] + params["b2"], 0.0)
    h3 = h2 @ params["w3"] + params["b3"]
    logits = h3 @ params["wo"] + params["bo"]
    return jax.nn.softmax(logits, axis=1)


if __name__ == "__main__":
    STATE_SPACE = 8   # LunarLander-v2 observation dim
    ACTION_SPACE = 4  # LunarLander-v2 action dim
    BATCH = 8

    key = jax.random.PRNGKey(0)
    kx, kp, kx2 = jax.random.split(key, 3)
    params = init_params(kp, STATE_SPACE, ACTION_SPACE)
    packed, sp, a_pad = pack_params(params, STATE_SPACE, ACTION_SPACE)

    # Small demo batch (single 128-lane grid step after padding).
    x = jax.random.normal(kx, (BATCH, STATE_SPACE), dtype=jnp.float32)
    probs = actor_net_forward(x, packed, state_space=STATE_SPACE,
                              action_space=ACTION_SPACE, sp=sp, a_pad=a_pad)
    probs = jax.block_until_ready(probs)

    ref = actor_ref(x, params)
    assert probs.shape == (BATCH, ACTION_SPACE)
    assert bool(jnp.max(jnp.abs(probs - ref)) < 1e-4)
    assert bool(jnp.all(jnp.abs(jnp.sum(probs, axis=1) - 1.0) < 1e-4))

    # Multi-step grid path (exercises batch padding + "parallel" axis sharding).
    x2 = jax.random.normal(kx2, (300, STATE_SPACE), dtype=jnp.float32)
    probs2 = jax.block_until_ready(
        actor_net_forward(x2, packed, state_space=STATE_SPACE,
                          action_space=ACTION_SPACE, sp=sp, a_pad=a_pad))
    assert probs2.shape == (300, ACTION_SPACE)
    assert bool(jnp.max(jnp.abs(probs2 - actor_ref(x2, params))) < 1e-4)

    # TODO(synk): get_action's Categorical sampling / log_prob is left to the
    # host (jax.random.categorical on the returned probs), not done in-kernel.
    print("KERNEL_OK")
</pallas_src>

<mosaic_0001>
module attributes {stable_mosaic.version = 11 : i64} {
  func.func @actor_kernel(%arg0: i32, %arg1: memref<8x128xf32, #tpu.memory_space<vmem>>, %arg2: memref<104x32xf32, #tpu.memory_space<vmem>>, %arg3: memref<8x128xf32, #tpu.memory_space<vmem>>) attributes {dimension_semantics = [#tpu.dimension_semantics<parallel>], iteration_bounds = array<i64: 1>, scalar_prefetch = 0 : i64, scratch_operands = 0 : i64, tpu.core_type = #tpu.core_type<tc>, window_params = [{transform_indices = @transform_0, window_bounds = array<i64: 8, 128>}, {pipeline_mode = #tpu.pipeline_mode<synchronous>, transform_indices = @transform_1, window_bounds = array<i64: 104, 32>}, {transform_indices = @transform_2, window_bounds = array<i64: 8, 128>}]} {
    %c0 = arith.constant 0 : index
    %c0_0 = arith.constant 0 : index
    %0 = vector.load %arg1[%c0, %c0_0] : memref<8x128xf32, #tpu.memory_space<vmem>>, vector<8x128xf32>
    %c0_1 = arith.constant 0 : index
    %c0_2 = arith.constant 0 : index
    %1 = vector.load %arg2[%c0_1, %c0_2] : memref<104x32xf32, #tpu.memory_space<vmem>>, vector<32x8xf32>
    %c32 = arith.constant 32 : index
    %c0_3 = arith.constant 0 : index
    %2 = vector.load %arg2[%c32, %c0_3] : memref<104x32xf32, #tpu.memory_space<vmem>>, vector<32x32xf32>
    %c64 = arith.constant 64 : index
    %c0_4 = arith.constant 0 : index
    %3 = vector.load %arg2[%c64, %c0_4] : memref<104x32xf32, #tpu.memory_space<vmem>>, vector<8x32xf32>
    %c72 = arith.constant 72 : index
    %c0_5 = arith.constant 0 : index
    %4 = vector.load %arg2[%c72, %c0_5] : memref<104x32xf32, #tpu.memory_space<vmem>>, vector<32x1xf32>
    %c72_6 = arith.constant 72 : index
    %c1 = arith.constant 1 : index
    %5 = vector.load %arg2[%c72_6, %c1] : memref<104x32xf32, #tpu.memory_space<vmem>>, vector<32x1xf32>
    %c72_7 = arith.constant 72 : index
    %c2 = arith.constant 2 : index
    %6 = vector.load %arg2[%c72_7, %c2] : memref<104x32xf32, #tpu.memory_space<vmem>>, vector<8x1xf32>
    %cst = arith.constant dense<0.000000e+00> : vector<32x128xf32>
    %7 = tpu.matmul %1, %0, %cst {dimension_numbers = #tpu.dot_dimension_numbers<[1], [0], [0], [1], [0, 0, 1, 1], [], []>} : vector<32x8xf32>, vector<8x128xf32>, vector<32x128xf32> -> vector<32x128xf32>
    %8 = vector.broadcast %4 : vector<32x1xf32> to vector<32x128xf32>
    %9 = arith.addf %7, %8 : vector<32x128xf32>
    %cst_8 = arith.constant 0.000000e+00 : f32
    %10 = vector.broadcast %cst_8 : f32 to vector<32x128xf32>
    %11 = arith.maximumf %9, %10 : vector<32x128xf32>
    %cst_9 = arith.constant dense<0.000000e+00> : vector<32x128xf32>
    %12 = tpu.matmul %2, %11, %cst_9 {dimension_numbers = #tpu.dot_dimension_numbers<[1], [0], [0], [1], [0, 0, 1, 1], [], []>} : vector<32x32xf32>, vector<32x128xf32>, vector<32x128xf32> -> vector<32x128xf32>
    %13 = vector.broadcast %5 : vector<32x1xf32> to vector<32x128xf32>
    %14 = arith.addf %12, %13 : vector<32x128xf32>
    %cst_10 = arith.constant 0.000000e+00 : f32
    %15 = vector.broadcast %cst_10 : f32 to vector<32x128xf32>
    %16 = arith.maximumf %14, %15 : vector<32x128xf32>
    %cst_11 = arith.constant dense<0.000000e+00> : vector<8x128xf32>
    %17 = tpu.matmul %3, %16, %cst_11 {dimension_numbers = #tpu.dot_dimension_numbers<[1], [0], [0], [1], [0, 0, 1, 1], [], []>} : vector<8x32xf32>, vector<32x128xf32>, vector<8x128xf32> -> vector<8x128xf32>
    %18 = vector.broadcast %6 : vector<8x1xf32> to vector<8x128xf32>
    %19 = arith.addf %17, %18 : vector<8x128xf32>
    %cst_12 = arith.constant dense<0xFF800000> : vector<128xf32>
    %20 = vector.multi_reduction <maximumf>, %19, %cst_12 [0] : vector<8x128xf32> to vector<128xf32>
    %21 = vector.shape_cast %20 : vector<128xf32> to vector<1x128xf32>
    %22 = vector.broadcast %21 : vector<1x128xf32> to vector<8x128xf32>
    %23 = arith.subf %19, %22 : vector<8x128xf32>
    %24 = math.exp %23 : vector<8x128xf32>
    %cst_13 = arith.constant dense<0.000000e+00> : vector<128xf32>
    %25 = vector.multi_reduction <add>, %24, %cst_13 [0] : vector<8x128xf32> to vector<128xf32>
    %26 = vector.shape_cast %25 : vector<128xf32> to vector<1x128xf32>
    %27 = vector.broadcast %26 : vector<1x128xf32> to vector<8x128xf32>
    %28 = arith.divf %24, %27 : vector<8x128xf32>
    %c0_14 = arith.constant 0 : index
    %c0_15 = arith.constant 0 : index
    %29 = vector.load %arg3[%c0_14, %c0_15] : memref<8x128xf32, #tpu.memory_space<vmem>>, vector<8x128xf32>
    tpu.vector_store %arg3[%c0_14, %c0_15], %28 {strides = array<i32>} : memref<8x128xf32, #tpu.memory_space<vmem>>, vector<8x128xf32>,
    return
  }
  func.func @transform_0(%arg0: i32) -> (i32, i32) {
    %c0_i32 = arith.constant 0 : i32
    %c0_i32_0 = arith.constant 0 : i32
    return %c0_i32, %arg0 : i32, i32
  }
  func.func @transform_1(%arg0: i32) -> (i32, i32) {
    %c0_i32 = arith.constant 0 : i32
    %c0_i32_0 = arith.constant 0 : i32
    %c0_i32_1 = arith.constant 0 : i32
    return %c0_i32, %c0_i32_0 : i32, i32
  }
  func.func @transform_2(%arg0: i32) -> (i32, i32) {
    %c0_i32 = arith.constant 0 : i32
    %c0_i32_0 = arith.constant 0 : i32
    return %c0_i32, %arg0 : i32, i32
  }
}

</mosaic_0001>

<llo_original>
// kernel: tpu_custom_call.1
$region0: #{tpu_custom_call.1}
  #allocation0 [shape = 'u32[]', space=smem, size = 0x4, offset = 0x4, fixed_abs, tag = 'smem constant byte address 0x4 - core index']
  #allocation1 [shape = 'u32[144,128]{1,0:T(1,128)}', space=vmem, size = 0x12000, scoped, tag = 'internal scratch']
  %s0 = inlined_call_operand.vmem [shape: f32[8,128], index: 0, kind: input, shape index: {}]
  %s1 = inlined_call_operand.vmem [shape: f32[104,32], index: 1, kind: input, shape index: {}]
  %s2 = inlined_call_operand.hbm [shape: f32[8,128], index: 2, kind: output, shape index: {}]
  %s3 = sld [smem:[#allocation0]]
  $region18: #{tpu_custom_call.1} parent=0
    _
  %s5 = ssub.s32 1, %s3
  %s6 = scalar_select 0, %s5, %s3
  $region1: #{tpu_custom_call.1} parent=0
    #allocation2 [shape = 'u8[4096]{0}', space=vmem, size = 0x1000, scoped, tag = 'output window, operand 0, single buffered']
    #allocation3 [shape = 's32[1]{0}', space=sflag, size = 0x4, scoped, tag = 'scoped memory for tpu_custom_call.1']
    %7 = vsyncpa [#allocation3], 0
    // Predicated region
    $region2: #{tpu_custom_call.1} parent=1 // pred_check
      _
    $region3: #{tpu_custom_call.1} parent=1 // pred_check_branch
      %9 = sbr.rel (0) target = $region5
    $region4: #{tpu_custom_call.1} parent=1 // pred_region
      _
    $region5: #{tpu_custom_call.1} parent=1 // pred_fallthru
      _
    // Predicated region
    $region6: #{tpu_custom_call.1} parent=1 // pred_check
      _
    $region7: #{tpu_custom_call.1} parent=1 // pred_check_branch
      %11 = sbr.rel (0) target = $region9
    $region8: #{tpu_custom_call.1} parent=1 // pred_region
      _
    $region9: #{tpu_custom_call.1} parent=1 // pred_fallthru
      _
    %v12 = vld [vmem:[%s0] sm:$0xff]
    %v13 = vld [vmem:[%s1] sm:$0xff]
    %v14 = vld [vmem:[%s1 + $0x8] sm:$0xff]
    %v15 = vld [vmem:[%s1 + $0x10] sm:$0xff]
    %v16 = vld [vmem:[%s1 + $0x18] sm:$0xff]
    %v17 = vld [vmem:[%s1 + $0x20] sm:$0xff]
    %v18 = vld [vmem:[%s1 + $0x28] sm:$0xff]
    %v19 = vld [vmem:[%s1 + $0x30] sm:$0xff]
    %v20 = vld [vmem:[%s1 + $0x38] sm:$0xff]
    %v21 = vld [vmem:[%s1 + $0x40] sm:$0xff]
    %v22 = vld [vmem:[%s1 + $0x48] sm:$0xff]
    %v23 = vld [vmem:[%s1 + $0x50] sm:$0xff]
    %v24 = vld [vmem:[%s1 + $0x58] sm:$0xff]
    %v25 = vld [vmem:[%s1 + $0x60] sm:$0xff]
    %27 = vset.pattern.permute.xlu0 0
    %28 = vperm.xlu0 %27, %v22
    %v29 = vpop.permute.xlu0 %28
    %32 = vset.pattern.permute.xlu0 0
    %33 = vperm.xlu0 %32, %v23
    %v34 = vpop.permute.xlu0 %33
    %37 = vset.pattern.permute.xlu0 0
    %38 = vperm.xlu0 %37, %v24
    %v39 = vpop.permute.xlu0 %38
    %42 = vset.pattern.permute.xlu0 0
    %43 = vperm.xlu0 %42, %v25
    %v44 = vpop.permute.xlu0 %43
    %vm46 = vcmask 64512
    %v48 = vsel %vm46, %v13, 0
    %v51 = vsel %vm46, %v14, 0
    %v54 = vsel %vm46, %v15, 0
    %v57 = vsel %vm46, %v16, 0
    %59 = vmatprep.subr.mxu0 0.0
    %60 = vmatpush1.msra.mxu0 %v12
    %61 = vmatprep.subr.mxu0 0.0
    %62 = vmatpush1.msra.mxu0 0.0
    %63 = vmatprep.subr.mxu0 0.0
    %64 = vmatpush1.msra.mxu0 0.0
    %65 = vmatprep.subr.mxu0 0.0
    %66 = vmatpush1.msra.mxu0 0.0
    %67 = vmatprep.subr.mxu0 0.0
    %68 = vmatpush1.msra.mxu0 0.0
    %69 = vmatprep.subr.mxu0 0.0
    %70 = vmatpush1.msra.mxu0 0.0
    %71 = vmatprep.subr.mxu0 0.0
    %72 = vmatpush1.msra.mxu0 0.0
    %73 = vmatprep.subr.mxu0 0.0
    %74 = vmatpush1.msra.mxu0 0.0
    %75 = vmatprep.subr.mxu0 0.0
    %76 = vmatpush1.msra.mxu0 0.0
    %77 = vmatprep.subr.mxu0 0.0
    %78 = vmatpush1.msra.mxu0 0.0
    %79 = vmatprep.subr.mxu0 0.0
    %80 = vmatpush1.msra.mxu0 0.0
    %81 = vmatprep.subr.mxu0 0.0
    %82 = vmatpush1.msra.mxu0 0.0
    %83 = vmatprep.subr.mxu0 0.0
    %84 = vmatpush1.msra.mxu0 0.0
    %85 = vmatprep.subr.mxu0 0.0
    %86 = vmatpush1.msra.mxu0 0.0
    %87 = vmatprep.subr.mxu0 0.0
    %88 = vmatpush1.msra.mxu0 0.0
    %89 = vmatprep.subr.mxu0 0.0
    %90 = vmatpush1.msra.mxu0 0.0
    %91 = vmatprep.subr.mxu0 0.0
    %92 = vmatpush1.msra.mxu0 0.0
    %93 = vmatprep.subr.mxu0 0.0
    %94 = vmatpush1.msra.mxu0 0.0
    %95 = vmatprep.subr.mxu0 0.0
    %96 = vmatpush1.msra.mxu0 0.0
    %97 = vmatprep.subr.mxu0 0.0
    %98 = vmatpush1.msra.mxu0 0.0
    %99 = vmatprep.subr.mxu0 0.0
    %100 = vmatpush1.msra.mxu0 0.0
    %101 = vmatprep.subr.mxu0 0.0
    %102 = vmatpush1.msra.mxu0 0.0
    %103 = vmatprep.subr.mxu0 0.0
    %104 = vmatpush1.msra.mxu0 0.0
    %105 = vmatprep.subr.mxu0 0.0
    %106 = vmatpush1.msra.mxu0 0.0
    %107 = vmatprep.subr.mxu0 0.0
    %108 = vmatpush1.msra.mxu0 0.0
    %109 = vmatprep.subr.mxu0 0.0
    %110 = vmatpush1.msra.mxu0 0.0
    %111 = vmatprep.subr.mxu0 0.0
    %112 = vmatpush1.msra.mxu0 0.0
    %113 = vmatprep.subr.mxu0 0.0
    %114 = vmatpush1.msra.mxu0 0.0
    %115 = vmatprep.subr.mxu0 0.0
    %116 = vmatpush1.msra.mxu0 0.0
    %117 = vmatprep.subr.mxu0 0.0
    %118 = vmatpush1.msra.mxu0 0.0
    %119 = vmatprep.subr.mxu0 0.0
    %120 = vmatpush1.msra.mxu0 0.0
    %121 = vmatprep.subr.mxu0 0.0
    %122 = vmatpush1.msra.mxu0 0.0
    %123 = vmatprep.mubr.f32.mxu0 0.0
    %124 = vmatmul.mubr.f32.gmra.mrb[0].mxu0 %v48
    %v125 = vpop.f32.mrb[0].mxu0
    %v126 = vadd.f32 %v29, %v125
    %v127 = vpop.f32.mrb[0].mxu0
    %128 = vmatprep.mubr.f32.mxu0 0.0
    %129 = vmatmul.mubr.f32.gmra.mrb[0].mxu0 %v51
    %v130 = vpop.f32.mrb[0].mxu0
    %v131 = vadd.f32 %v34, %v130
    %v132 = vpop.f32.mrb[0].mxu0
    %133 = vmatprep.mubr.f32.mxu0 0.0
    %134 = vmatmul.mubr.f32.gmra.mrb[0].mxu0 %v54
    %v135 = vpop.f32.mrb[0].mxu0
    %v136 = vadd.f32 %v39, %v135
    %v137 = vpop.f32.mrb[0].mxu0
    %138 = vmatprep.mubr.f32.mxu0 0.0
    %139 = vmatmul.mubr.f32.gmra.mrb[0].mxu0 %v57
    %v140 = vpop.f32.mrb[0].mxu0
    %v141 = vadd.f32 %v44, %v140
    %v142 = vpop.f32.mrb[0].mxu0
    %143 = vdwg.mxu0
    %v144 = vmax.f32 %v126, 0.0
    %v145 = vmax.f32 %v131, 0.0
    %v146 = vmax.f32 %v136, 0.0
    %v147 = vmax.f32 %v141, 0.0
    %148 = vset.pattern.permute.xlu0 1
    %149 = vperm.xlu0 %148, %v22
    %v150 = vpop.permute.xlu0 %149
    %152 = vset.pattern.permute.xlu0 1
    %153 = vperm.xlu0 %152, %v23
    %v154 = vpop.permute.xlu0 %153
    %156 = vset.pattern.permute.xlu0 1
    %157 = vperm.xlu0 %156, %v24
    %v158 = vpop.permute.xlu0 %157
    %160 = vset.pattern.permute.xlu0 1
    %161 = vperm.xlu0 %160, %v25
    %v162 = vpop.permute.xlu0 %161
    %vm164 = vcmask 261120
    %v166 = vsel %vm164, %v17, 0
    %v169 = vsel %vm164, %v18, 0
    %v172 = vsel %vm164, %v19, 0
    %v175 = vsel %vm164, %v20, 0
    %177 = vmatprep.subr.mxu0 0.0
    %178 = vmatpush1.msra.mxu0 %v144
    %179 = vmatprep.subr.mxu0 0.0
    %180 = vmatpush1.msra.mxu0 %v145
    %181 = vmatprep.subr.mxu0 0.0
    %182 = vmatpush1.msra.mxu0 %v146
    %183 = vmatprep.subr.mxu0 0.0
    %184 = vmatpush1.msra.mxu0 %v147
    %185 = vmatprep.subr.mxu0 0.0
    %186 = vmatpush1.msra.mxu0 0.0
    %187 = vmatprep.subr.mxu0 0.0
    %188 = vmatpush1.msra.mxu0 0.0
    %189 = vmatprep.subr.mxu0 0.0
    %190 = vmatpush1.msra.mxu0 0.0
    %191 = vmatprep.subr.mxu0 0.0
    %192 = vmatpush1.msra.mxu0 0.0
    %193 = vmatprep.subr.mxu0 0.0
    %194 = vmatpush1.msra.mxu0 0.0
    %195 = vmatprep.subr.mxu0 0.0
    %196 = vmatpush1.msra.mxu0 0.0
    %197 = vmatprep.subr.mxu0 0.0
    %198 = vmatpush1.msra.mxu0 0.0
    %199 = vmatprep.subr.mxu0 0.0
    %200 = vmatpush1.msra.mxu0 0.0
    %201 = vmatprep.subr.mxu0 0.0
    %202 = vmatpush1.msra.mxu0 0.0
    %203 = vmatprep.subr.mxu0 0.0
    %204 = vmatpush1.msra.mxu0 0.0
    %205 = vmatprep.subr.mxu0 0.0
    %206 = vmatpush1.msra.mxu0 0.0
    %207 = vmatprep.subr.mxu0 0.0
    %208 = vmatpush1.msra.mxu0 0.0
    %209 = vmatprep.subr.mxu0 0.0
    %210 = vmatpush1.msra.mxu0 0.0
    %211 = vmatprep.subr.mxu0 0.0
    %212 = vmatpush1.msra.mxu0 0.0
    %213 = vmatprep.subr.mxu0 0.0
    %214 = vmatpush1.msra.mxu0 0.0
    %215 = vmatprep.subr.mxu0 0.0
    %216 = vmatpush1.msra.mxu0 0.0
    %217 = vmatprep.subr.mxu0 0.0
    %218 = vmatpush1.msra.mxu0 0.0
    %219 = vmatprep.subr.mxu0 0.0
    %220 = vmatpush1.msra.mxu0 0.0
    %221 = vmatprep.subr.mxu0 0.0
    %222 = vmatpush1.msra.mxu0 0.0
    %223 = vmatprep.subr.mxu0 0.0
    %224 = vmatpush1.msra.mxu0 0.0
    %225 = vmatprep.subr.mxu0 0.0
    %226 = vmatpush1.msra.mxu0 0.0
    %227 = vmatprep.subr.mxu0 0.0
    %228 = vmatpush1.msra.mxu0 0.0
    %229 = vmatprep.subr.mxu0 0.0
    %230 = vmatpush1.msra.mxu0 0.0
    %231 = vmatprep.subr.mxu0 0.0
    %232 = vmatpush1.msra.mxu0 0.0
    %233 = vmatprep.subr.mxu0 0.0
    %234 = vmatpush1.msra.mxu0 0.0
    %235 = vmatprep.subr.mxu0 0.0
    %236 = vmatpush1.msra.mxu0 0.0
    %237 = vmatprep.subr.mxu0 0.0
    %238 = vmatpush1.msra.mxu0 0.0
    %239 = vmatprep.subr.mxu0 0.0
    %240 = vmatpush1.msra.mxu0 0.0
    %241 = vmatprep.mubr.f32.mxu0 0.0
    %242 = vmatmul.mubr.f32.gmra.mrb[0].mxu0 %v166
    %v243 = vpop.f32.mrb[0].mxu0
    %v244 = vadd.f32 %v150, %v243
    %v245 = vpop.f32.mrb[0].mxu0
    %246 = vmatprep.mubr.f32.mxu0 0.0
    %247 = vmatmul.mubr.f32.gmra.mrb[0].mxu0 %v169
    %v248 = vpop.f32.mrb[0].mxu0
    %v249 = vadd.f32 %v154, %v248
    %v250 = vpop.f32.mrb[0].mxu0
    %251 = vmatprep.mubr.f32.mxu0 0.0
    %252 = vmatmul.mubr.f32.gmra.mrb[0].mxu0 %v172
    %v253 = vpop.f32.mrb[0].mxu0
    %v254 = vadd.f32 %v158, %v253
    %v255 = vpop.f32.mrb[0].mxu0
    %256 = vmatprep.mubr.f32.mxu0 0.0
    %257 = vmatmul.mubr.f32.gmra.mrb[0].mxu0 %v175
    %v258 = vpop.f32.mrb[0].mxu0
    %v259 = vadd.f32 %v162, %v258
    %v260 = vpop.f32.mrb[0].mxu0
    %261 = vdwg.mxu0
    %v262 = vmax.f32 %v244, 0.0
    %v263 = vmax.f32 %v249, 0.0
    %v264 = vmax.f32 %v254, 0.0
    %v265 = vmax.f32 %v259, 0.0
    %266 = vset.pattern.permute.xlu0 2
    %267 = vperm.xlu0 %266, %v22
    %v268 = vpop.permute.xlu0 %267
    %v271 = vsel %vm164, %v21, 0
    %273 = vmatprep.subr.mxu0 0.0
    %274 = vmatpush1.msra.mxu0 %v262
    %275 = vmatprep.subr.mxu0 0.0
    %276 = vmatpush1.msra.mxu0 %v263
    %277 = vmatprep.subr.mxu0 0.0
    %278 = vmatpush1.msra.mxu0 %v264
    %279 = vmatprep.subr.mxu0 0.0
    %280 = vmatpush1.msra.mxu0 %v265
    %281 = vmatprep.subr.mxu0 0.0
    %282 = vmatpush1.msra.mxu0 0.0
    %283 = vmatprep.subr.mxu0 0.0
    %284 = vmatpush1.msra.mxu0 0.0
    %285 = vmatprep.subr.mxu0 0.0
    %286 = vmatpush1.msra.mxu0 0.0
    %287 = vmatprep.subr.mxu0 0.0
    %288 = vmatpush1.msra.mxu0 0.0
    %289 = vmatprep.subr.mxu0 0.0
    %290 = vmatpush1.msra.mxu0 0.0
    %291 = vmatprep.subr.mxu0 0.0
    %292 = vmatpush1.msra.mxu0 0.0
    %293 = vmatprep.subr.mxu0 0.0
    %294 = vmatpush1.msra.mxu0 0.0
    %295 = vmatprep.subr.mxu0 0.0
    %296 = vmatpush1.msra.mxu0 0.0
    %297 = vmatprep.subr.mxu0 0.0
    %298 = vmatpush1.msra.mxu0 0.0
    %299 = vmatprep.subr.mxu0 0.0
    %300 = vmatpush1.msra.mxu0 0.0
    %301 = vmatprep.subr.mxu0 0.0
    %302 = vmatpush1.msra.mxu0 0.0
    %303 = vmatprep.subr.mxu0 0.0
    %304 = vmatpush1.msra.mxu0 0.0
    %305 = vmatprep.subr.mxu0 0.0
    %306 = vmatpush1.msra.mxu0 0.0
    %307 = vmatprep.subr.mxu0 0.0
    %308 = vmatpush1.msra.mxu0 0.0
    %309 = vmatprep.subr.mxu0 0.0
    %310 = vmatpush1.msra.mxu0 0.0
    %311 = vmatprep.subr.mxu0 0.0
    %312 = vmatpush1.msra.mxu0 0.0
    %313 = vmatprep.subr.mxu0 0.0
    %314 = vmatpush1.msra.mxu0 0.0
    %315 = vmatprep.subr.mxu0 0.0
    %316 = vmatpush1.msra.mxu0 0.0
    %317 = vmatprep.subr.mxu0 0.0
    %318 = vmatpush1.msra.mxu0 0.0
    %319 = vmatprep.subr.mxu0 0.0
    %320 = vmatpush1.msra.mxu0 0.0
    %321 = vmatprep.subr.mxu0 0.0
    %322 = vmatpush1.msra.mxu0 0.0
    %323 = vmatprep.subr.mxu0 0.0
    %324 = vmatpush1.msra.mxu0 0.0
    %325 = vmatprep.subr.mxu0 0.0
    %326 = vmatpush1.msra.mxu0 0.0
    %327 = vmatprep.subr.mxu0 0.0
    %328 = vmatpush1.msra.mxu0 0.0
    %329 = vmatprep.subr.mxu0 0.0
    %330 = vmatpush1.msra.mxu0 0.0
    %331 = vmatprep.subr.mxu0 0.0
    %332 = vmatpush1.msra.mxu0 0.0
    %333 = vmatprep.subr.mxu0 0.0
    %334 = vmatpush1.msra.mxu0 0.0
    %335 = vmatprep.subr.mxu0 0.0
    %336 = vmatpush1.msra.mxu0 0.0
    %337 = vmatprep.mubr.f32.mxu0 0.0
    %338 = vmatmul.mubr.f32.gmra.mrb[0].mxu0 %v271
    %v339 = vpop.f32.mrb[0].mxu0
    %v340 = vadd.f32 %v268, %v339
    %v341 = vpop.f32.mrb[0].mxu0
    %342 = vdwg.mxu0
    %v343 = vrot.slane %v340, 4
    %v344 = vmax.f32 %v340, %v343
    %v345 = vrot.slane %v344, 2
    %v346 = vmax.f32 %v344, %v345
    %v347 = vrot.slane %v346, 1
    %v348 = vmax.f32 %v346, %v347
    %v349 = vsub.f32 %v340, %v348
    %v350 = vmul.f32 %v349, 1.442695
    %v351 = vpow.pop %v350
    %v352 = vrot.slane %v351, 4
    %v353 = vadd.f32 %v351, %v352
    %v354 = vrot.slane %v353, 2
    %v355 = vadd.f32 %v353, %v354
    %v356 = vrot.slane %v355, 1
    %v357 = vadd.f32 %v355, %v356
    %v358 = vrcp.pop %v357
    %v359 = vmul.f32 %v351, %v358
    %360 = vst [vmem:[#allocation2] sm:$0xff] %v359
    // Predicated region
    $region10: #{tpu_custom_call.1} parent=1 // pred_check
      _
    $region11: #{tpu_custom_call.1} parent=1 // pred_check_branch
      %362 = sbr.rel (0) target = $region13
    $region12: #{tpu_custom_call.1} parent=1 // pred_region
      %s364 = ssub.s32 128, 128
      %365 = vsyncadd [#allocation3], %s364
      %s367 = sshll.u32 [#allocation2], 4
      %s368 = int_to_ptr.vmem [resolvable:$true] %s367
      %370 = dma.vmem_to_hbm [thread:$0]  %s368, 128, %s2, [#allocation3]
    $region13: #{tpu_custom_call.1} parent=1 // pred_fallthru
      _
    // Predicated region
    $region14: #{tpu_custom_call.1} parent=1 // pred_check
      _
    $region15: #{tpu_custom_call.1} parent=1 // pred_check_branch
      %372 = sbr.rel (0) target = $region17
    $region16: #{tpu_custom_call.1} parent=1 // pred_region
      %373 = dma.done [#allocation3], 128
    $region17: #{tpu_custom_call.1} parent=1 // pred_fallthru
      _
    %374 = vsyncpa [#allocation3], 1

</llo_original>
